<compile_context>
chip_gen: v7x
topology: tpu7x:2x2x1
jax: 0.10.0
libtpu: 0.0.40
codegen_flags: <defaults>
</compile_context>

<pallas_src>
import functools

import jax
import jax.numpy as jnp
from jax.experimental import pallas as pl
from jax.experimental.pallas import tpu as pltpu

NEG_BIG = -1e30  # bias for padded fc columns -> exp() underflows to exactly 0


# ----------------------------------------------------------------------------
# VMEM-aware tiling helpers
# ----------------------------------------------------------------------------
def _vmem_limit(nbytes):
    """Measured block need + headroom; floor 16 MiB, cap 40 MiB (fits all of
    v5e/v6e 128 MiB and v7x 64 MiB physical VMEM)."""
    return int(min(max(nbytes * 5 // 4 + (1 << 20), 16 << 20), 40 << 20))


def _pick_row_tile(m, per_row_bytes, fixed_bytes=0, budget=12 << 20):
    """Largest row tile (cap 2048) whose double-buffered blocks fit budget."""
    avail = max(budget - fixed_bytes, 1 << 20)
    cap = max(256, min(2048, avail // max(per_row_bytes, 1)))
    if m <= cap:
        return m                      # full dim is always a legal block
    return max(256, (cap // 256) * 256)


def _pick_n_tile(n):
    if n <= 256:
        return n
    for tn in (256, 128, 64, 32, 16, 8):
        if n % tn == 0:
            return tn
    return n


def _pick_time_block(t, n_tile, hidden, budget=8 << 20):
    """Time-block sized against double-buffered bf16 gx + y blocks."""
    g4 = 4 * hidden
    for tb in (16, 8, 4, 2, 1):
        if t % tb == 0:
            blk = (2 * 2 * tb * n_tile * g4 * 2      # gx fwd+bwd, 2-buffered
                   + 2 * 2 * tb * n_tile * hidden * 2)  # y fwd+bwd, 2-buffered
            if blk <= budget:
                return tb
    return 1


# ----------------------------------------------------------------------------
# Kernel 1: layer-0 gate projection, both directions fused in the lane dim.
#   gx = X @ W_all   with W_all = [W_ih_fwd^T | W_ih_bwd^T]  -> [M, 8H] bf16
# (bias is added later, in f32, inside the recurrence)
# ----------------------------------------------------------------------------
def _proj_single_kernel(x_ref, w_ref, o_ref):
    o_ref[...] = jnp.dot(x_ref[...], w_ref[...],
                         preferred_element_type=jnp.float32).astype(o_ref.dtype)


def project_gates_single(x2d, w_all):
    """x2d: [M, D] bf16; w_all: [D, 8H] bf16 -> [M, 8H] bf16."""
    M, D = x2d.shape
    G8 = w_all.shape[-1]
    fixed = 2 * D * G8 * 2
    tm = _pick_row_tile(M, per_row_bytes=2 * D * 2 + 2 * G8 * 2,
                        fixed_bytes=fixed)
    nm = pl.cdiv(M, tm)
    vmem = _vmem_limit(2 * tm * D * 2 + 2 * tm * G8 * 2 + fixed)
    return pl.pallas_call(
        _proj_single_kernel,
        out_shape=jax.ShapeDtypeStruct((M, G8), jnp.bfloat16),
        grid_spec=pltpu.PrefetchScalarGridSpec(
            num_scalar_prefetch=0,
            grid=(nm,),
            in_specs=[
                pl.BlockSpec((tm, D), lambda m: (m, 0)),
                pl.BlockSpec((D, G8), lambda m: (0, 0)),
            ],
            out_specs=pl.BlockSpec((tm, G8), lambda m: (m, 0)),
        ),
        compiler_params=pltpu.CompilerParams(
            dimension_semantics=("parallel",),
            vmem_limit_bytes=vmem),
    )(x2d, w_all)


# ----------------------------------------------------------------------------
# Kernel 2: layer>=1 gate projection.  The previous layer's bidirectional
# output is kept as two separate [M, H] tensors (no concat); the 2H-wide input
# matmul is two H-wide matmuls summed; both directions fused in the lane dim.
# ----------------------------------------------------------------------------
def _proj_dual_kernel(yf_ref, yb_ref, wf_ref, wb_ref, o_ref):
    acc = jnp.dot(yf_ref[...], wf_ref[...], preferred_element_type=jnp.float32)
    acc = acc + jnp.dot(yb_ref[...], wb_ref[...],
                        preferred_element_type=jnp.float32)
    o_ref[...] = acc.astype(o_ref.dtype)


def project_gates_dual(yf2d, yb2d, wf_all, wb_all):
    """yf2d/yb2d: [M, H] bf16; wf_all/wb_all: [H, 8H] bf16 -> [M, 8H] bf16."""
    M, H = yf2d.shape
    G8 = wf_all.shape[-1]
    fixed = 2 * 2 * H * G8 * 2
    tm = _pick_row_tile(M, per_row_bytes=2 * 2 * H * 2 + 2 * G8 * 2,
                        fixed_bytes=fixed)
    nm = pl.cdiv(M, tm)
    vmem = _vmem_limit(2 * 2 * tm * H * 2 + 2 * tm * G8 * 2 + fixed)
    return pl.pallas_call(
        _proj_dual_kernel,
        out_shape=jax.ShapeDtypeStruct((M, G8), jnp.bfloat16),
        grid_spec=pltpu.PrefetchScalarGridSpec(
            num_scalar_prefetch=0,
            grid=(nm,),
            in_specs=[
                pl.BlockSpec((tm, H), lambda m: (m, 0)),
                pl.BlockSpec((tm, H), lambda m: (m, 0)),
                pl.BlockSpec((H, G8), lambda m: (0, 0)),
                pl.BlockSpec((H, G8), lambda m: (0, 0)),
            ],
            out_specs=pl.BlockSpec((tm, G8), lambda m: (m, 0)),
        ),
        compiler_params=pltpu.CompilerParams(
            dimension_semantics=("parallel",),
            vmem_limit_bytes=vmem),
    )(yf2d, yb2d, wf_all, wb_all)


# ----------------------------------------------------------------------------
# Kernel 3: bidirectional recurrence with both directions interleaved in one
# kernel.  Grid = (N-tile ["parallel"], time-block ["arbitrary"]).  Forward
# consumes time block g, backward consumes time block nb-1-g (reversed block
# order via index_map + reversed static order inside the block).  Only the
# small (tn,H)x(H,4H) bf16 recurrent matmul runs here; input gates (bf16) are
# precomputed; the bias add and all gate math are f32.  Gate order: i,f,o,g.
# ----------------------------------------------------------------------------
def _bilstm_rec_kernel(gxf_ref, gxb_ref, whh_ref, bias_ref,
                       yf_ref, yb_ref, hf, cf, hb, cb, *, tb, hidden):
    g = pl.program_id(1)

    @pl.when(g == 0)
    def _():
        hf[...] = jnp.zeros(hf.shape, hf.dtype)
        cf[...] = jnp.zeros(cf.shape, cf.dtype)
        hb[...] = jnp.zeros(hb.shape, hb.dtype)
        cb[...] = jnp.zeros(cb.shape, cb.dtype)

    H = hidden
    whh_f = whh_ref[0]                 # (H, 4H) bf16
    whh_b = whh_ref[1]
    bias = bias_ref[...]               # (1, 8H) f32
    b_f = bias[:, :4 * H]
    b_b = bias[:, 4 * H:]

    def cell(gx_row, b, whh, h_ref, c_ref):
        gates = (gx_row.astype(jnp.float32) + b
                 + jnp.dot(h_ref[...].astype(jnp.bfloat16), whh,
                           preferred_element_type=jnp.float32))
        # gate columns are (i, f, o, g): one contiguous sigmoid slice, one tanh
        # slice (single EUP launch each).  Lane-aligned when H % 32 == 0.
        s = jax.nn.sigmoid(gates[:, :3 * H])
        i_g = s[:, 0 * H:1 * H]
        f_g = s[:, 1 * H:2 * H]
        o_g = s[:, 2 * H:3 * H]
        g_g = jnp.tanh(gates[:, 3 * H:])
        c_new = f_g * c_ref[...] + i_g * g_g
        h_new = o_g * jnp.tanh(c_new)
        c_ref[...] = c_new
        h_ref[...] = h_new
        return h_new

    # Statically indexed, fully unrolled time loop.  Both direction chains are
    # issued in the same iteration so their MXU/EUP latencies overlap.
    for i in range(tb):
        tfw = i                        # forward local time (increasing)
        trv = tb - 1 - i               # backward local time (decreasing)
        h_new_f = cell(gxf_ref[tfw], b_f, whh_f, hf, cf)
        h_new_b = cell(gxb_ref[trv], b_b, whh_b, hb, cb)
        yf_ref[tfw] = h_new_f.astype(yf_ref.dtype)
        yb_ref[trv] = h_new_b.astype(yb_ref.dtype)


def bilstm_recurrence(gx, whh_t_stack, bias):
    """gx: [T, N, 8H] bf16 (cols [:4H] = fwd gates, [4H:] = bwd gates);
    whh_t_stack: [2, H, 4H] bf16; bias: [1, 8H] f32.
    Returns (y_fwd, y_bwd), each [T, N, H] bf16."""
    T, N, G8 = gx.shape
    H = whh_t_stack.shape[1]
    G4 = 4 * H
    tn = _pick_n_tile(N)
    nn = N // tn
    tb = _pick_time_block(T, tn, H)
    nb = T // tb

    vmem = _vmem_limit(
        2 * 2 * tb * tn * G4 * 2      # gx fwd+bwd blocks (double-buffered, bf16)
        + 2 * 2 * tb * tn * H * 2     # y fwd+bwd blocks (double-buffered, bf16)
        + 2 * 2 * H * G4 * 2          # whh stack
        + 2 * G8 * 4                  # bias
        + 4 * tn * H * 4)             # h/c carries (scratch)

    kernel = functools.partial(_bilstm_rec_kernel, tb=tb, hidden=H)
    return pl.pallas_call(
        kernel,
        out_shape=(jax.ShapeDtypeStruct((T, N, H), jnp.bfloat16),
                   jax.ShapeDtypeStruct((T, N, H), jnp.bfloat16)),
        grid_spec=pltpu.PrefetchScalarGridSpec(
            num_scalar_prefetch=0,
            grid=(nn, nb),
            in_specs=[
                # fwd gates: lane-block 0; bwd gates: lane-block 1, reversed time
                pl.BlockSpec((tb, tn, G4), lambda n, g: (g, n, 0)),
                pl.BlockSpec((tb, tn, G4), lambda n, g: (nb - 1 - g, n, 1)),
                pl.BlockSpec((2, H, G4), lambda n, g: (0, 0, 0)),
                pl.BlockSpec((1, G8), lambda n, g: (0, 0)),
            ],
            out_specs=(
                pl.BlockSpec((tb, tn, H), lambda n, g: (g, n, 0)),
                pl.BlockSpec((tb, tn, H), lambda n, g: (nb - 1 - g, n, 0)),
            ),
            scratch_shapes=[
                pltpu.VMEM((tn, H), jnp.float32),   # h fwd
                pltpu.VMEM((tn, H), jnp.float32),   # c fwd
                pltpu.VMEM((tn, H), jnp.float32),   # h bwd
                pltpu.VMEM((tn, H), jnp.float32),   # c bwd
            ],
        ),
        compiler_params=pltpu.CompilerParams(
            dimension_semantics=("parallel", "arbitrary"),
            vmem_limit_bytes=vmem),
    )(gx, gx, whh_t_stack, bias)


# ----------------------------------------------------------------------------
# Kernel 4: fc + softmax, row-tiled, lane-dense padded (O_pad = 128) outputs.
# Padded columns have weight 0 and bias -1e30 so softmax over the real classes
# is exact.  Logits stay f32 (the "raw" module output); probs are bf16 to cut
# store traffic.  Returns (raw logits, probs) like the module's (y, logit).
# ----------------------------------------------------------------------------
def _fc_softmax_kernel(yf_ref, yb_ref, wf_ref, wb_ref, b_ref,
                       logit_ref, prob_ref):
    logits = (
        jnp.dot(yf_ref[...], wf_ref[...], preferred_element_type=jnp.float32)
        + jnp.dot(yb_ref[...], wb_ref[...], preferred_element_type=jnp.float32)
        + b_ref[...])
    logit_ref[...] = logits
    m = jnp.max(logits, axis=-1, keepdims=True)
    e = jnp.exp(logits - m)
    prob_ref[...] = (e * pl.reciprocal(jnp.sum(e, axis=-1, keepdims=True),
                                       approx=True)).astype(prob_ref.dtype)


def fc_softmax(yf2d, yb2d, wf_pad, wb_pad, b_pad):
    """yf2d/yb2d: [M, H] bf16; w*_pad: [H, O_pad] bf16; b_pad: [1, O_pad] f32."""
    M, H = yf2d.shape
    OP = wf_pad.shape[-1]
    fixed = 2 * 2 * H * OP * 2 + 2 * OP * 4
    tm = _pick_row_tile(
        M, per_row_bytes=2 * 2 * H * 2 + 2 * OP * 4 + 2 * OP * 2,
        fixed_bytes=fixed)
    nm = pl.cdiv(M, tm)
    vmem = _vmem_limit(2 * 2 * tm * H * 2 + 2 * tm * OP * 4
                       + 2 * tm * OP * 2 + fixed)
    return pl.pallas_call(
        _fc_softmax_kernel,
        out_shape=(jax.ShapeDtypeStruct((M, OP), jnp.float32),
                   jax.ShapeDtypeStruct((M, OP), jnp.bfloat16)),
        grid_spec=pltpu.PrefetchScalarGridSpec(
            num_scalar_prefetch=0,
            grid=(nm,),
            in_specs=[
                pl.BlockSpec((tm, H), lambda m: (m, 0)),
                pl.BlockSpec((tm, H), lambda m: (m, 0)),
                pl.BlockSpec((H, OP), lambda m: (0, 0)),
                pl.BlockSpec((H, OP), lambda m: (0, 0)),
                pl.BlockSpec((1, OP), lambda m: (0, 0)),
            ],
            out_specs=(
                pl.BlockSpec((tm, OP), lambda m: (m, 0)),
                pl.BlockSpec((tm, OP), lambda m: (m, 0)),
            ),
        ),
        compiler_params=pltpu.CompilerParams(
            dimension_semantics=("parallel",),
            vmem_limit_bytes=vmem),
    )(yf2d, yb2d, wf_pad, wb_pad, b_pad)


# ----------------------------------------------------------------------------
# Parameters: pre-transposed / pre-fused / pre-reordered / pre-padded at init.
# ----------------------------------------------------------------------------
def _reorder_ifgo_to_ifog(w_t, hidden):
    """Reorder the trailing 4H gate axis from torch (i, f, g, o) to (i, f, o, g)."""
    H = hidden
    return jnp.concatenate(
        [w_t[..., 0 * H:2 * H], w_t[..., 3 * H:4 * H], w_t[..., 2 * H:3 * H]],
        axis=-1)


def init_params(key, vocab, bert_size, blstm_size, output_size, num_layers=2):
    H = blstm_size
    assert (4 * H) % 128 == 0, "blstm_size must be a multiple of 32"
    G4 = 4 * H
    o_pad = max(128, ((output_size + 127) // 128) * 128)
    scale = 0.1

    ks = list(jax.random.split(key, 1 + num_layers * 2 * 4 + 2))
    it = iter(ks)

    params = {"bert_size": bert_size, "blstm_size": H,
              "output_size": output_size, "o_pad": o_pad}
    params["embedding"] = scale * jax.random.normal(
        next(it), (vocab, bert_size), jnp.float32)

    layers = []
    for layer in range(num_layers):
        d_in = bert_size if layer == 0 else 2 * H
        wih, whh, bias = [], [], []
        for _ in range(2):          # direction 0 = forward, 1 = backward
            w_ih = scale * jax.random.normal(next(it), (G4, d_in), jnp.float32)
            w_hh = scale * jax.random.normal(next(it), (G4, H), jnp.float32)
            b_ih = scale * jax.random.normal(next(it), (G4,), jnp.float32)
            b_hh = scale * jax.random.normal(next(it), (G4,), jnp.float32)
            wih.append(w_ih)
            whh.append(w_hh)
            bias.append(_reorder_ifgo_to_ifog((b_ih + b_hh).reshape(1, G4), H))
        entry = {
            # bf16 recurrent weights -> native MXU rate (f32 acc in-kernel)
            "whh_t": jnp.stack(
                [_reorder_ifgo_to_ifog(w.T, H) for w in whh]).astype(jnp.bfloat16),
            "bias": jnp.concatenate(bias, axis=-1).astype(jnp.float32),  # [1, 8H]
        }
        if layer == 0:
            # direction-fused input weights: [D, 8H] = [fwd gates | bwd gates]
            entry["wih_all"] = jnp.concatenate(
                [_reorder_ifgo_to_ifog(w.T, H) for w in wih],
                axis=-1).astype(jnp.bfloat16)
        else:
            # split by input half (y_fwd / y_bwd), fused over direction columns
            entry["wih_f_all"] = jnp.concatenate(
                [_reorder_ifgo_to_ifog(w[:, :H].T, H) for w in wih],
                axis=-1).astype(jnp.bfloat16)                            # [H, 8H]
            entry["wih_b_all"] = jnp.concatenate(
                [_reorder_ifgo_to_ifog(w[:, H:].T, H) for w in wih],
                axis=-1).astype(jnp.bfloat16)                            # [H, 8H]
        layers.append(entry)
    params["lstm"] = layers

    # fc weight in torch layout (O, 2H); split halves, transpose, lane-pad.
    fc_w = scale * jax.random.normal(next(it), (output_size, 2 * H), jnp.float32)
    fc_b = scale * jax.random.normal(next(it), (output_size,), jnp.float32)
    wf = jnp.zeros((H, o_pad), jnp.float32).at[:, :output_size].set(fc_w[:, :H].T)
    wb = jnp.zeros((H, o_pad), jnp.float32).at[:, :output_size].set(fc_w[:, H:].T)
    bp = jnp.full((1, o_pad), NEG_BIG, jnp.float32).at[0, :output_size].set(fc_b)
    params["fc_wf"] = wf.astype(jnp.bfloat16)
    params["fc_wb"] = wb.astype(jnp.bfloat16)
    params["fc_b"] = bp
    return params


# ----------------------------------------------------------------------------
# Forward pass
# ----------------------------------------------------------------------------
def bert_blstm_punc_forward(params, token_ids):
    # TODO(synk): the pretrained BERT encoder (AutoModel.from_pretrained) has no
    # Pallas equivalent without checkpoint weights; replaced by a deterministic
    # embedding lookup producing the [B, S, bert_size] hidden states.
    B, S = token_ids.shape
    H = params["blstm_size"]
    O = params["output_size"]

    x = jnp.take(params["embedding"], token_ids, axis=0)         # [B, S, D]
    # nn.LSTM without batch_first: time axis = B (=T), batch axis = S (=N).
    T, N = B, S
    x2d = x.reshape(T * N, -1).astype(jnp.bfloat16)

    yf2d = yb2d = None
    for li, layer in enumerate(params["lstm"]):
        if li == 0:
            gx = project_gates_single(x2d, layer["wih_all"])
        else:
            gx = project_gates_dual(yf2d, yb2d,
                                    layer["wih_f_all"], layer["wih_b_all"])
        gx = gx.reshape(T, N, 8 * H)                             # free reshape
        yf, yb = bilstm_recurrence(gx, layer["whh_t"], layer["bias"])
        yf2d = yf.reshape(T * N, H)                              # free reshape
        yb2d = yb.reshape(T * N, H)

    # dropout(p=0.0) -> identity
    logits_pad, probs_pad = fc_softmax(yf2d, yb2d, params["fc_wf"],
                                       params["fc_wb"], params["fc_b"])
    y_out = logits_pad[:, :O]     # torch: y  (raw fc output, shape [-1, O], f32)
    logit = probs_pad[:, :O]      # torch: logit = softmax(y)   (bf16)
    return y_out, logit


# ----------------------------------------------------------------------------
# Pure-JAX f32 reference (same prepared weights) for validation.
# ----------------------------------------------------------------------------
def reference_forward(params, token_ids):
    H = params["blstm_size"]
    O = params["output_size"]
    G4 = 4 * H
    x = jnp.take(params["embedding"], token_ids, axis=0)          # [T, N, D]
    T, N, _ = x.shape

    def run_dir(gx_seq, whh_t):
        def step(carry, g_t):
            h, c = carry
            gates = g_t + h @ whh_t
            i = jax.nn.sigmoid(gates[:, 0 * H:1 * H])
            f = jax.nn.sigmoid(gates[:, 1 * H:2 * H])
            o = jax.nn.sigmoid(gates[:, 2 * H:3 * H])
            g = jnp.tanh(gates[:, 3 * H:4 * H])
            c = f * c + i * g
            h = o * jnp.tanh(c)
            return (h, c), h
        init = (jnp.zeros((N, H), jnp.float32), jnp.zeros((N, H), jnp.float32))
        _, ys = jax.lax.scan(step, init, gx_seq)
        return ys

    yf = yb = None
    for li, layer in enumerate(params["lstm"]):
        whh = layer["whh_t"].astype(jnp.float32)
        bias = layer["bias"]
        b_f, b_b = bias[:, :G4], bias[:, G4:]
        if li == 0:
            w = layer["wih_all"].astype(jnp.float32)
            gx_f = jnp.einsum("tnd,dg->tng", x, w[:, :G4]) + b_f
            gx_b = jnp.einsum("tnd,dg->tng", x, w[:, G4:]) + b_b
        else:
            wfa = layer["wih_f_all"].astype(jnp.float32)
            wba = layer["wih_b_all"].astype(jnp.float32)
            gx_f = (jnp.einsum("tnh,hg->tng", yf, wfa[:, :G4])
                    + jnp.einsum("tnh,hg->tng", yb, wba[:, :G4]) + b_f)
            gx_b = (jnp.einsum("tnh,hg->tng", yf, wfa[:, G4:])
                    + jnp.einsum("tnh,hg->tng", yb, wba[:, G4:]) + b_b)
        yf = run_dir(gx_f, whh[0])
        yb = run_dir(gx_b[::-1], whh[1])[::-1]

    fwf = params["fc_wf"].astype(jnp.float32)[:, :O]
    fwb = params["fc_wb"].astype(jnp.float32)[:, :O]
    b = params["fc_b"][:, :O]
    logits = yf.reshape(T * N, H) @ fwf + yb.reshape(T * N, H) @ fwb + b
    probs = jax.nn.softmax(logits, axis=-1)
    return logits, probs


if __name__ == "__main__":
    # Small, module-consistent stand-in shapes (production: D=768, H=128).
    B, S = 4, 8             # B = LSTM time axis, S = LSTM batch axis
    VOCAB = 50
    BERT_SIZE = 128
    BLSTM_SIZE = 32
    OUTPUT_SIZE = 5

    key = jax.random.PRNGKey(0)
    k_params, k_tokens = jax.random.split(key)
    params = init_params(k_params, VOCAB, BERT_SIZE, BLSTM_SIZE, OUTPUT_SIZE)
    token_ids = jax.random.randint(k_tokens, (B, S), 0, VOCAB, dtype=jnp.int32)

    y, logit = bert_blstm_punc_forward(params, token_ids)
    y = jax.block_until_ready(y)
    logit = jax.block_until_ready(logit)

    assert y.shape == (B * S, OUTPUT_SIZE)
    assert logit.shape == (B * S, OUTPUT_SIZE)
    assert bool(jnp.all(jnp.isfinite(y)))
    logit_f32 = logit.astype(jnp.float32)
    # approx reciprocal + bf16 probs -> loose sum-to-1 tolerance
    assert bool(jnp.allclose(jnp.sum(logit_f32, axis=-1), 1.0, atol=2e-2))

    # Validate against a pure-JAX f32 reference using the same prepared weights
    # (differences come only from bf16 operands/activations + approx reciprocal).
    y_ref, logit_ref = reference_forward(params, token_ids)
    assert bool(jnp.allclose(y, y_ref, atol=3e-2))
    assert bool(jnp.allclose(logit_f32, logit_ref, atol=3e-2))

    print("KERNEL_OK")
</pallas_src>

<mosaic_0001>
module attributes {stable_mosaic.version = 11 : i64} {
  func.func @_proj_single_kernel(%arg0: i32, %arg1: memref<32x128xbf16, #tpu.memory_space<vmem>>, %arg2: memref<128x256xbf16, #tpu.memory_space<vmem>>, %arg3: memref<32x256xbf16, #tpu.memory_space<vmem>>) attributes {dimension_semantics = [#tpu.dimension_semantics<parallel>], iteration_bounds = array<i64: 1>, scalar_prefetch = 0 : i64, scratch_operands = 0 : i64, tpu.core_type = #tpu.core_type<tc>, window_params = [{transform_indices = @transform_0, window_bounds = array<i64: 32, 128>}, {pipeline_mode = #tpu.pipeline_mode<synchronous>, transform_indices = @transform_1, window_bounds = array<i64: 128, 256>}, {transform_indices = @transform_2, window_bounds = array<i64: 32, 256>}]} {
    %c0 = arith.constant 0 : index
    %c0_0 = arith.constant 0 : index
    %0 = vector.load %arg1[%c0, %c0_0] : memref<32x128xbf16, #tpu.memory_space<vmem>>, vector<32x128xbf16>
    %c0_1 = arith.constant 0 : index
    %c0_2 = arith.constant 0 : index
    %1 = vector.load %arg2[%c0_1, %c0_2] : memref<128x256xbf16, #tpu.memory_space<vmem>>, vector<128x256xbf16>
    %cst = arith.constant dense<0.000000e+00> : vector<32x256xf32>
    %2 = tpu.matmul %0, %1, %cst {dimension_numbers = #tpu.dot_dimension_numbers<[1], [0], [0], [1], [0, 0, 1, 1], [], []>} : vector<32x128xbf16>, vector<128x256xbf16>, vector<32x256xf32> -> vector<32x256xf32>
    %3 = arith.truncf %2 : vector<32x256xf32> to vector<32x256xbf16>
    %c0_3 = arith.constant 0 : index
    %c0_4 = arith.constant 0 : index
    %4 = vector.load %arg3[%c0_3, %c0_4] : memref<32x256xbf16, #tpu.memory_space<vmem>>, vector<32x256xbf16>
    tpu.vector_store %arg3[%c0_3, %c0_4], %3 {strides = array<i32>} : memref<32x256xbf16, #tpu.memory_space<vmem>>, vector<32x256xbf16>,
    return
  }
  func.func @transform_0(%arg0: i32) -> (i32, i32) {
    %c0_i32 = arith.constant 0 : i32
    %c0_i32_0 = arith.constant 0 : i32
    return %arg0, %c0_i32 : i32, i32
  }
  func.func @transform_1(%arg0: i32) -> (i32, i32) {
    %c0_i32 = arith.constant 0 : i32
    %c0_i32_0 = arith.constant 0 : i32
    %c0_i32_1 = arith.constant 0 : i32
    return %c0_i32, %c0_i32_0 : i32, i32
  }
  func.func @transform_2(%arg0: i32) -> (i32, i32) {
    %c0_i32 = arith.constant 0 : i32
    %c0_i32_0 = arith.constant 0 : i32
    return %arg0, %c0_i32 : i32, i32
  }
}

</mosaic_0001>

<llo_original>
// kernel: tpu_custom_call.1
$region0: #{tpu_custom_call.1}
  #allocation0 [shape = 'u32[]', space=smem, size = 0x4, offset = 0x4, fixed_abs, tag = 'smem constant byte address 0x4 - core index']
  #allocation1 [shape = 'u32[144,128]{1,0:T(1,128)}', space=vmem, size = 0x12000, scoped, tag = 'internal scratch']
  %s0 = inlined_call_operand.hbm [shape: bf16[32,128], index: 0, kind: input, shape index: {}]
  %s1 = inlined_call_operand.hbm [shape: bf16[128,256], index: 1, kind: input, shape index: {}]
  %s2 = inlined_call_operand.hbm [shape: bf16[32,256], index: 2, kind: output, shape index: {}]
  %s3 = sld [smem:[#allocation0]]
  $region26: #{tpu_custom_call.1} parent=0
    _
  %s5 = ssub.s32 1, %s3
  %s6 = scalar_select 0, %s5, %s3
  $region1: #{tpu_custom_call.1} parent=0
    #allocation2 [shape = 'u8[8192]{0}', space=vmem, size = 0x2000, scoped, tag = 'input window, operand 0, single buffered']
    #allocation3 [shape = 's32[1]{0}', space=sflag, size = 0x4, scoped, tag = 'scoped memory for tpu_custom_call.1']
    #allocation4 [shape = 's32[1]{0}', space=sflag, size = 0x4, scoped, tag = 'scoped memory for tpu_custom_call.1']
    #allocation5 [shape = 'u8[65536]{0}', space=vmem, size = 0x10000, scoped, tag = 'input window, operand 1, single buffered']
    #allocation6 [shape = 's32[1]{0}', space=sflag, size = 0x4, scoped, tag = 'scoped memory for tpu_custom_call.1']
    #allocation7 [shape = 'u8[16384]{0}', space=vmem, size = 0x4000, scoped, tag = 'output window, operand 0, single buffered']
    %7 = vsyncpa [#allocation3], 0
    %8 = vsyncpa [#allocation6], 0
    %9 = vsyncpa [#allocation4], 0
    // Predicated region
    $region2: #{tpu_custom_call.1} parent=1 // pred_check
      _
    $region3: #{tpu_custom_call.1} parent=1 // pred_check_branch
      %11 = sbr.rel (0) target = $region5
    $region4: #{tpu_custom_call.1} parent=1 // pred_region
      %s13 = ssub.s32 256, 256
      %14 = vsyncadd [#allocation3], %s13
      %s15 = sshll.u32 [#allocation2], 4
      %s16 = int_to_ptr.vmem [resolvable:$true] %s15
      %21 = dma.hbm_to_vmem [thread:$0]  %s0, 256, %s16, [#allocation3], 64, 64, 4
    $region5: #{tpu_custom_call.1} parent=1 // pred_fallthru
      _
    // Predicated region
    $region6: #{tpu_custom_call.1} parent=1 // pred_check
      _
    $region7: #{tpu_custom_call.1} parent=1 // pred_check_branch
      %23 = sbr.rel (0) target = $region9
    $region8: #{tpu_custom_call.1} parent=1 // pred_region
      %s25 = ssub.s32 2048, 2048
      %26 = vsyncadd [#allocation6], %s25
      %s27 = sshll.u32 [#allocation5], 4
      %s28 = int_to_ptr.vmem [resolvable:$true] %s27
      %33 = dma.hbm_to_vmem [thread:$0]  %s1, 2048, %s28, [#allocation6], 128, 128, 8
    $region9: #{tpu_custom_call.1} parent=1 // pred_fallthru
      _
    // Predicated region
    $region10: #{tpu_custom_call.1} parent=1 // pred_check
      _
    $region11: #{tpu_custom_call.1} parent=1 // pred_check_branch
      %35 = sbr.rel (0) target = $region13
    $region12: #{tpu_custom_call.1} parent=1 // pred_region
      %36 = dma.done [#allocation3], 256
    $region13: #{tpu_custom_call.1} parent=1 // pred_fallthru
      _
    // Predicated region
    $region14: #{tpu_custom_call.1} parent=1 // pred_check
      _
    $region15: #{tpu_custom_call.1} parent=1 // pred_check_branch
      %38 = sbr.rel (0) target = $region17
    $region16: #{tpu_custom_call.1} parent=1 // pred_region
      %39 = dma.done [#allocation6], 2048
    $region17: #{tpu_custom_call.1} parent=1 // pred_fallthru
      _
    %v41 = vld [vmem:[#allocation2] sm:$0xf]
    %v42 = vld [vmem:[#allocation2 + $0x4] sm:$0xf]
    %v43 = vld [vmem:[#allocation2 + $0x8] sm:$0xf]
    %v44 = vld [vmem:[#allocation2 + $0xc] sm:$0xf]
    %v45 = vld [vmem:[#allocation5] sm:$0xff]
    %v46 = vld [vmem:[#allocation5 + $0x8] sm:$0xff]
    %v47 = vld [vmem:[#allocation5 + $0x10] sm:$0xff]
    %v48 = vld [vmem:[#allocation5 + $0x18] sm:$0xff]
    %v49 = vld [vmem:[#allocation5 + $0x20] sm:$0xff]
    %v50 = vld [vmem:[#allocation5 + $0x28] sm:$0xff]
    %v51 = vld [vmem:[#allocation5 + $0x30] sm:$0xff]
    %v52 = vld [vmem:[#allocation5 + $0x38] sm:$0xff]
    %v53 = vld [vmem:[#allocation5 + $0x40] sm:$0xff]
    %v54 = vld [vmem:[#allocation5 + $0x48] sm:$0xff]
    %v55 = vld [vmem:[#allocation5 + $0x50] sm:$0xff]
    %v56 = vld [vmem:[#allocation5 + $0x58] sm:$0xff]
    %v57 = vld [vmem:[#allocation5 + $0x60] sm:$0xff]
    %v58 = vld [vmem:[#allocation5 + $0x68] sm:$0xff]
    %v59 = vld [vmem:[#allocation5 + $0x70] sm:$0xff]
    %v60 = vld [vmem:[#allocation5 + $0x78] sm:$0xff]
    %v65 = vunpack.c.l.b16 %v41
    %v66 = vunpack.c.l.b16 %v42
    %v67 = vunpack.c.l.b16 %v43
    %v68 = vunpack.c.l.b16 %v44
    %v69 = vpack.c.b16 %v66, %v65
    %v70 = vpack.c.b16 %v68, %v67
    %v89 = vunpack.c.l.b16 %v45
    %v90 = vunpack.c.h.b16 %v45
    %v91 = vunpack.c.l.b16 %v46
    %v92 = vunpack.c.h.b16 %v46
    %v93 = vunpack.c.l.b16 %v47
    %v94 = vunpack.c.h.b16 %v47
    %v95 = vunpack.c.l.b16 %v48
    %v96 = vunpack.c.h.b16 %v48
    %v97 = vunpack.c.l.b16 %v49
    %v98 = vunpack.c.h.b16 %v49
    %v99 = vunpack.c.l.b16 %v50
    %v100 = vunpack.c.h.b16 %v50
    %v101 = vunpack.c.l.b16 %v51
    %v102 = vunpack.c.h.b16 %v51
    %v103 = vunpack.c.l.b16 %v52
    %v104 = vunpack.c.h.b16 %v52
    %v105 = vunpack.c.l.b16 %v53
    %v106 = vunpack.c.h.b16 %v53
    %v107 = vunpack.c.l.b16 %v54
    %v108 = vunpack.c.h.b16 %v54
    %v109 = vunpack.c.l.b16 %v55
    %v110 = vunpack.c.h.b16 %v55
    %v111 = vunpack.c.l.b16 %v56
    %v112 = vunpack.c.h.b16 %v56
    %v113 = vunpack.c.l.b16 %v57
    %v114 = vunpack.c.h.b16 %v57
    %v115 = vunpack.c.l.b16 %v58
    %v116 = vunpack.c.h.b16 %v58
    %v117 = vunpack.c.l.b16 %v59
    %v118 = vunpack.c.h.b16 %v59
    %v119 = vunpack.c.l.b16 %v60
    %v120 = vunpack.c.h.b16 %v60
    %v121 = vpack.c.b16 %v91, %v89
    %v122 = vpack.c.b16 %v92, %v90
    %v123 = vpack.c.b16 %v95, %v93
    %v124 = vpack.c.b16 %v96, %v94
    %v125 = vpack.c.b16 %v99, %v97
    %v126 = vpack.c.b16 %v100, %v98
    %v127 = vpack.c.b16 %v103, %v101
    %v128 = vpack.c.b16 %v104, %v102
    %v129 = vpack.c.b16 %v107, %v105
    %v130 = vpack.c.b16 %v108, %v106
    %v131 = vpack.c.b16 %v111, %v109
    %v132 = vpack.c.b16 %v112, %v110
    %v133 = vpack.c.b16 %v115, %v113
    %v134 = vpack.c.b16 %v116, %v114
    %v135 = vpack.c.b16 %v119, %v117
    %v136 = vpack.c.b16 %v120, %v118
    %153 = vmatprep.subr.bf16.mxu0 %v122
    %154 = vmatpush1.bf16.msra.mxu0 %v121
    %155 = vmatprep.subr.bf16.mxu0 %v124
    %156 = vmatpush1.bf16.msra.mxu0 %v123
    %157 = vmatprep.subr.bf16.mxu0 %v126
    %158 = vmatpush1.bf16.msra.mxu0 %v125
    %159 = vmatprep.subr.bf16.mxu0 %v128
    %160 = vmatpush1.bf16.msra.mxu0 %v127
    %161 = vmatprep.subr.bf16.mxu0 %v130
    %162 = vmatpush1.bf16.msra.mxu0 %v129
    %163 = vmatprep.subr.bf16.mxu0 %v132
    %164 = vmatpush1.bf16.msra.mxu0 %v131
    %165 = vmatprep.subr.bf16.mxu0 %v134
    %166 = vmatpush1.bf16.msra.mxu0 %v133
    %167 = vmatprep.subr.bf16.mxu0 %v136
    %168 = vmatpush1.bf16.msra.mxu0 %v135
    %169 = vmatprep.subr.bf16.mxu0 0
    %170 = vmatpush1.bf16.msra.mxu0 0
    %171 = vmatprep.subr.bf16.mxu0 0
    %172 = vmatpush1.bf16.msra.mxu0 0
    %173 = vmatprep.subr.bf16.mxu0 0
    %174 = vmatpush1.bf16.msra.mxu0 0
    %175 = vmatprep.subr.bf16.mxu0 0
    %176 = vmatpush1.bf16.msra.mxu0 0
    %177 = vmatprep.subr.bf16.mxu0 0
    %178 = vmatpush1.bf16.msra.mxu0 0
    %179 = vmatprep.subr.bf16.mxu0 0
    %180 = vmatpush1.bf16.msra.mxu0 0
    %181 = vmatprep.subr.bf16.mxu0 0
    %182 = vmatpush1.bf16.msra.mxu0 0
    %183 = vmatprep.subr.bf16.mxu0 0
    %184 = vmatpush1.bf16.msra.mxu0 0
    %185 = vmatprep.mubr.bf16.mxu0 0
    %186 = vmatmul.mubr.bf16.gmra.mrb[0].mxu0 %v69
    %v187 = vpop.f32.mrb[0].mxu0
    %v188 = vadd.f32 0.0, %v187
    %v189 = vpop.f32.mrb[0].mxu0
    %v190 = vadd.f32 0.0, %v189
    %v191 = vpop.f32.mrb[0].mxu0
    %v192 = vadd.f32 0.0, %v191
    %v193 = vpop.f32.mrb[0].mxu0
    %v194 = vadd.f32 0.0, %v193
    %195 = vmatprep.mubr.bf16.mxu0 0
    %196 = vmatmul.mubr.bf16.gmra.mrb[0].mxu0 %v70
    %v197 = vpop.f32.mrb[0].mxu0
    %v198 = vadd.f32 0.0, %v197
    %v199 = vpop.f32.mrb[0].mxu0
    %v200 = vadd.f32 0.0, %v199
    %v201 = vpop.f32.mrb[0].mxu0
    %v202 = vadd.f32 0.0, %v201
    %v203 = vpop.f32.mrb[0].mxu0
    %v204 = vadd.f32 0.0, %v203
    %205 = vdwg.mxu0
    %v206 = vpack.c.bf16 %v192, %v188
    %v207 = vpack.c.bf16 %v194, %v190
    %v208 = vpack.c.bf16 %v202, %v198
    %v209 = vpack.c.bf16 %v204, %v200
    %v214 = vunpack.c.l.b16 %v206
    %v215 = vunpack.c.l.b16 %v207
    %v216 = vunpack.c.h.b16 %v206
    %v217 = vunpack.c.h.b16 %v207
    %v218 = vunpack.c.l.b16 %v208
    %v219 = vunpack.c.l.b16 %v209
    %v220 = vunpack.c.h.b16 %v208
    %v221 = vunpack.c.h.b16 %v209
    %v222 = vpack.c.b16 %v215, %v214
    %v223 = vpack.c.b16 %v217, %v216
    %v224 = vpack.c.b16 %v219, %v218
    %v225 = vpack.c.b16 %v221, %v220
    %230 = vst [vmem:[#allocation7] sm:$0xff] %v222
    %231 = vst [vmem:[#allocation7 + $0x8] sm:$0xff] %v223
    %232 = vst [vmem:[#allocation7 + $0x10] sm:$0xff] %v224
    %233 = vst [vmem:[#allocation7 + $0x18] sm:$0xff] %v225
    // Predicated region
    $region18: #{tpu_custom_call.1} parent=1 // pred_check
      _
    $region19: #{tpu_custom_call.1} parent=1 // pred_check_branch
      %235 = sbr.rel (0) target = $region21
    $region20: #{tpu_custom_call.1} parent=1 // pred_region
      %s237 = ssub.s32 512, 512
      %238 = vsyncadd [#allocation4], %s237
      %s239 = sshll.u32 [#allocation7], 4
      %s240 = int_to_ptr.vmem [resolvable:$true] %s239
      %245 = dma.vmem_to_hbm [thread:$0]  %s240, 512, %s2, [#allocation4], 128, 128, 8
    $region21: #{tpu_custom_call.1} parent=1 // pred_fallthru
      _
    // Predicated region
    $region22: #{tpu_custom_call.1} parent=1 // pred_check
      _
    $region23: #{tpu_custom_call.1} parent=1 // pred_check_branch
      %247 = sbr.rel (0) target = $region25
    $region24: #{tpu_custom_call.1} parent=1 // pred_region
      %248 = dma.done [#allocation4], 512
    $region25: #{tpu_custom_call.1} parent=1 // pred_fallthru
      _
    %249 = vsyncpa [#allocation3], 1
    %250 = vsyncpa [#allocation6], 1
    %251 = vsyncpa [#allocation4], 1

</llo_original>
